<compile_context>
chip_gen: v7x
topology: tpu7x:2x2x1
jax: 0.10.0
libtpu: 0.0.40
codegen_flags: <defaults>
</compile_context>

<pallas_src>
import functools

import jax
import jax.numpy as jnp
from jax.experimental import pallas as pl
from jax.experimental.pallas import tpu as pltpu

_MIB = 2 ** 20


# --------------------------------------------------------------------------
# Hardware-aware policy helpers
# --------------------------------------------------------------------------
def _vmem_capacity_bytes():
    """Physical VMEM per TensorCore; conservative (v7x-sized) fallback."""
    try:
        info = pltpu.get_tpu_info()
        cap = int(getattr(info, "vmem_capacity_bytes", 0))
        if cap > 0:
            return cap
    except Exception:
        pass
    return 64 * _MIB


def _assumed_tensorcores(vmem_cap):
    # v7x exposes 64 MiB VMEM per TC and has 2 TCs/chip (megacore);
    # v5e/v6e have 128 MiB and a single TC.
    return 2 if vmem_cap <= 80 * _MIB else 1


def _compiler_params(sem, working_bytes, vmem_cap):
    # Clamp the scoped-VMEM limit to ~85% of *this generation's* physical VMEM
    # (~56 MiB on v7x, ~110 MiB on v5e/v6e) instead of a fixed 96 MiB cap.
    safe = int(0.85 * vmem_cap)
    limit = int(min(safe, max(16 * _MIB, int(working_bytes) + 2 * _MIB)))
    return pltpu.CompilerParams(dimension_semantics=sem, vmem_limit_bytes=limit)


def _nbytes(*arrs):
    return sum(int(a.size) * jnp.dtype(a.dtype).itemsize for a in arrs)


def _pick_block_hw(hw, c, itemsize, target_bytes, min_steps):
    """Lane-aligned HW block width targeting `target_bytes` per x block."""
    hw_padded = ((hw + 127) // 128) * 128
    blk = max(128, (int(target_bytes) // (c * itemsize)) // 128 * 128)
    blk = min(blk, hw_padded)
    if min_steps > 1:
        # Keep at least `min_steps` HW blocks so the parallel HW axis can be
        # sharded across TensorCores even when B is small (v7x megacore).
        blk = min(blk, max(128, (hw_padded // min_steps) // 128 * 128))
    return int(blk)


# --------------------------------------------------------------------------
# Shared gate computation (tiny: never on the per-HW-block hot path).
# --------------------------------------------------------------------------
def _gate_from_stats(s, w1_ref, b1_ref, w2_ref, b2_ref):
    """s: (M, C) f32 pooled stats -> gate (M, C) f32."""
    w1 = w1_ref[...].astype(jnp.float32)   # (C, C//4)
    w2 = w2_ref[...].astype(jnp.float32)   # (C//4, C)
    b1 = b1_ref[...].astype(jnp.float32)   # (1, C//4)
    b2 = b2_ref[...].astype(jnp.float32)   # (1, C)
    h = jnp.maximum(jnp.dot(s, w1, preferred_element_type=jnp.float32) + b1, 0.0)
    z = jnp.dot(h, w2, preferred_element_type=jnp.float32) + b2
    # 1/(1+exp(-z)) is NaN-safe: exp(-z) overflow -> inf -> gate = 0 (correct limit).
    return 1.0 / (1.0 + jnp.exp(-z))


# --------------------------------------------------------------------------
# Path 1: per-batch resident slab, x read from HBM exactly once.
# --------------------------------------------------------------------------
def _ema_resident_kernel(x_ref, w1_ref, b1_ref, w2_ref, b2_ref, o_ref):
    x = x_ref[...]                                            # (1, C, HW), native dtype
    inv_hw = 1.0 / x.shape[-1]
    # Reductions accumulate in f32; the dominant broadcast multiply stays in
    # the input's native dtype (no full-tile f32 materialization).
    ssum = jnp.sum(x, axis=-1, dtype=jnp.float32)             # (1, C)
    smax = jnp.max(x, axis=-1).astype(jnp.float32)            # (1, C)
    gate = _gate_from_stats(ssum * inv_hw + smax, w1_ref, b1_ref, w2_ref, b2_ref)
    o_ref[...] = x * gate[:, :, None].astype(x.dtype)


def _ema_resident(x3, w1, b1r, w2, b2r, vmem_cap):
    B, C, HW = x3.shape
    C4 = w1.shape[1]
    itemsize = jnp.dtype(x3.dtype).itemsize
    # in + out slabs, double-buffered, plus resident weights.
    working = 4 * C * HW * itemsize + _nbytes(w1, b1r, w2, b2r)
    return pl.pallas_call(
        _ema_resident_kernel,
        out_shape=jax.ShapeDtypeStruct((B, C, HW), x3.dtype),
        grid=(B,),
        in_specs=[
            pl.BlockSpec((1, C, HW), lambda b: (b, 0, 0)),
            # Weights/biases: constant index maps -> loaded once, VMEM-resident.
            pl.BlockSpec((C, C4), lambda b: (0, 0)),
            pl.BlockSpec((1, C4), lambda b: (0, 0)),
            pl.BlockSpec((C4, C), lambda b: (0, 0)),
            pl.BlockSpec((1, C), lambda b: (0, 0)),
        ],
        out_specs=pl.BlockSpec((1, C, HW), lambda b: (b, 0, 0)),
        compiler_params=_compiler_params(("parallel",), working, vmem_cap),
    )(x3, w1, b1r, w2, b2r)


# --------------------------------------------------------------------------
# Path 2 (fallback): tiled. pass 1 -> partial stats, gate kernel, pass 2 -> scale
# --------------------------------------------------------------------------
def _ema_stats_kernel(x_ref, o_ref, *, hw, blk_hw, needs_mask):
    k = pl.program_id(1)
    x = x_ref[...]                                            # (1, C, blk_hw)
    if needs_mask:
        # Last HW block may extend past the true spatial extent: mask padding
        # lanes (0 for the sum, -inf for the running max).
        lane = jax.lax.broadcasted_iota(jnp.int32, x.shape, 2) + k * blk_hw
        valid = lane < hw
        x_sum = jnp.where(valid, x, 0.0)
        x_max = jnp.where(valid, x, -jnp.inf)
    else:
        x_sum = x
        x_max = x
    psum = jnp.sum(x_sum, axis=-1, dtype=jnp.float32)         # (1, C)
    pmax = jnp.max(x_max, axis=-1).astype(jnp.float32)        # (1, C)
    o_ref[...] = jnp.concatenate([psum, pmax], axis=0)[None, None]   # (1,1,2,C)


def _ema_gate_kernel(stats_ref, w1_ref, b1_ref, w2_ref, b2_ref, gate_ref, *, hw):
    stats = stats_ref[...]                                    # (B, nk, 2, C) f32
    ssum = jnp.sum(stats[:, :, 0, :], axis=1)                 # (B, C)
    smax = jnp.max(stats[:, :, 1, :], axis=1)                 # (B, C)
    s = ssum * (1.0 / hw) + smax
    gate = _gate_from_stats(s, w1_ref, b1_ref, w2_ref, b2_ref)
    gate_ref[...] = gate[:, None, :]                          # (B, 1, C)


def _ema_scale_kernel(gate_ref, x_ref, o_ref):
    x = x_ref[...]                                            # (1, C, blk_hw), native dtype
    g = gate_ref[...][:, 0, :]                                # (1, C) f32
    o_ref[...] = x * g[:, :, None].astype(x.dtype)


def _ema_tiled(x3, w1, b1r, w2, b2r, blk1, blk2, vmem_cap):
    B, C, HW = x3.shape
    C4 = w1.shape[1]
    itemsize = jnp.dtype(x3.dtype).itemsize
    nk1 = pl.cdiv(HW, blk1)
    nk2 = pl.cdiv(HW, blk2)

    # Pass 1: per-(batch, HW-block) partial sum / max. Each grid step owns its
    # own (1,1,2,C) stats slot, so there is no scratch carry and BOTH grid
    # axes are "parallel" (megacore-shardable even for B == 1 on v7x).
    stats_kernel = functools.partial(
        _ema_stats_kernel, hw=HW, blk_hw=blk1, needs_mask=(HW % blk1) != 0)
    stats = pl.pallas_call(
        stats_kernel,
        out_shape=jax.ShapeDtypeStruct((B, nk1, 2, C), jnp.float32),
        grid=(B, nk1),
        in_specs=[pl.BlockSpec((1, C, blk1), lambda b, k: (b, 0, k))],
        out_specs=pl.BlockSpec((1, 1, 2, C), lambda b, k: (b, k, 0, 0)),
        compiler_params=_compiler_params(("parallel", "parallel"),
                                         2 * C * blk1 * itemsize, vmem_cap),
    )(x3)

    # Gate: combine partials over HW blocks and run the tiny MLP for all B at
    # once ((B,C)@(C,C//4) gives the MXU a sane M; weights stay out of pass 1).
    gate = pl.pallas_call(
        functools.partial(_ema_gate_kernel, hw=HW),
        out_shape=jax.ShapeDtypeStruct((B, 1, C), jnp.float32),
        grid=(1,),
        in_specs=[
            pl.BlockSpec((B, nk1, 2, C), lambda i: (0, 0, 0, 0)),
            pl.BlockSpec((C, C4), lambda i: (0, 0)),
            pl.BlockSpec((1, C4), lambda i: (0, 0)),
            pl.BlockSpec((C4, C), lambda i: (0, 0)),
            pl.BlockSpec((1, C), lambda i: (0, 0)),
        ],
        out_specs=pl.BlockSpec((B, 1, C), lambda i: (0, 0, 0)),
        compiler_params=_compiler_params(
            ("arbitrary",),
            4 * B * nk1 * 2 * C + _nbytes(w1, b1r, w2, b2r), vmem_cap),
    )(stats, w1, b1r, w2, b2r)

    # Pass 2: lane-dense broadcast multiply, fully parallel grid.
    y3 = pl.pallas_call(
        _ema_scale_kernel,
        out_shape=jax.ShapeDtypeStruct((B, C, HW), x3.dtype),
        grid=(B, nk2),
        in_specs=[
            pl.BlockSpec((1, 1, C), lambda b, k: (b, 0, 0)),
            pl.BlockSpec((1, C, blk2), lambda b, k: (b, 0, k)),
        ],
        out_specs=pl.BlockSpec((1, C, blk2), lambda b, k: (b, 0, k)),
        compiler_params=_compiler_params(("parallel", "parallel"),
                                         4 * C * blk2 * itemsize, vmem_cap),
    )(gate, x3)
    return y3


# --------------------------------------------------------------------------
# Wrapper
# --------------------------------------------------------------------------
def ema_forward(x_nchw, w1, b1, w2, b2, *, force_tiled=False, blk_hw=None,
                max_resident_bytes=None):
    """EMA forward. x_nchw: (B, C, H, W).

    Weights stored as (in, out): w1 (C, C//4), b1 (C//4,), w2 (C//4, C), b2 (C,).
    """
    B, C, H, W = x_nchw.shape
    HW = H * W
    x3 = x_nchw.reshape(B, C, HW)
    b1r = b1.reshape(1, -1)
    b2r = b2.reshape(1, -1)
    itemsize = jnp.dtype(x_nchw.dtype).itemsize
    slab_bytes = C * HW * itemsize

    vmem_cap = _vmem_capacity_bytes()
    safe_vmem = int(0.85 * vmem_cap)
    num_tc = _assumed_tensorcores(vmem_cap)

    if max_resident_bytes is None:
        # Resident path needs 4 slabs (in + out, double-buffered) + weights.
        # ~26 MiB slabs on v5e/v6e (128 MiB VMEM), ~12 MiB on v7x (64 MiB).
        max_resident_bytes = max(
            4 * _MIB, (safe_vmem - _nbytes(w1, b1r, w2, b2r) - 4 * _MIB) // 4)

    # v7x only: with 2 TCs/chip, a grid of (B,) with B < 2 idles a core; the
    # tiled path's (B, nk) parallel grids keep both cores fed.
    prefer_tiled_for_megacore = (
        num_tc > 1 and B < num_tc and slab_bytes > 4 * _MIB)

    if (not force_tiled and slab_bytes <= max_resident_bytes
            and not prefer_tiled_for_megacore):
        y3 = _ema_resident(x3, w1, b1r, w2, b2r, vmem_cap)
    else:
        hw_padded = ((HW + 127) // 128) * 128
        min_steps = num_tc if B < num_tc else 1
        if blk_hw is not None:
            blk2 = min(max(128, (int(blk_hw) // 128) * 128), hw_padded)
            blk1 = min(2 * blk2, hw_padded)
        else:
            # Pass 2 double-buffers in+out (4x block); pass 1 only the input
            # (2x block), so its block can be ~2x at the same VMEM footprint.
            blk2 = _pick_block_hw(HW, C, itemsize,
                                  min(8 * _MIB, safe_vmem // 8), min_steps)
            blk1 = _pick_block_hw(HW, C, itemsize,
                                  min(16 * _MIB, safe_vmem // 4), min_steps)
        y3 = _ema_tiled(x3, w1, b1r, w2, b2r, blk1, blk2, vmem_cap)

    return y3.reshape(B, C, H, W)


# --------------------------------------------------------------------------
# Params / reference
# --------------------------------------------------------------------------
def init_params(c, key):
    """Deterministic init matching the shapes of EMA(c).fc (stored as (in, out))."""
    c4 = c // 4
    k1, k2, k3, k4 = jax.random.split(key, 4)
    w1 = jax.random.normal(k1, (c, c4), jnp.float32) * 0.1
    b1 = jax.random.normal(k2, (c4,), jnp.float32) * 0.1
    w2 = jax.random.normal(k3, (c4, c), jnp.float32) * 0.1
    b2 = jax.random.normal(k4, (c,), jnp.float32) * 0.1
    return w1, b1, w2, b2


def ema_reference(x, w1, b1, w2, b2):
    """Pure-JAX reference for correctness check."""
    avg = jnp.mean(x, axis=(2, 3))
    mx = jnp.max(x, axis=(2, 3))
    s = avg + mx
    h = jnp.maximum(s @ w1 + b1, 0.0)
    gate = jax.nn.sigmoid(h @ w2 + b2)
    return x * gate[:, :, None, None]


if __name__ == "__main__":
    key = jax.random.PRNGKey(0)
    kx, kp = jax.random.split(key)

    B, C, H, W = 2, 16, 16, 16   # c=16 -> c//4=4
    x = jax.random.normal(kx, (B, C, H, W), jnp.float32)
    w1, b1, w2, b2 = init_params(C, kp)
    y_ref = ema_reference(x, w1, b1, w2, b2)

    # Primary path: per-batch resident slab (single HBM read of x).
    y = jax.block_until_ready(ema_forward(x, w1, b1, w2, b2))
    assert y.shape == x.shape
    assert jnp.allclose(y, y_ref, atol=1e-5, rtol=1e-5), "resident path mismatch"

    # Tiled fallback (used for large C*HW, or small B on v7x).
    y_t = jax.block_until_ready(
        ema_forward(x, w1, b1, w2, b2, force_tiled=True, blk_hw=128))
    assert jnp.allclose(y_t, y_ref, atol=1e-5, rtol=1e-5), "tiled path mismatch"

    # Non-128-multiple spatial extent: exercises the masked last HW block.
    B2, C2, H2, W2 = 1, 16, 13, 11   # HW = 143
    x2 = jax.random.normal(kx, (B2, C2, H2, W2), jnp.float32)
    y2_ref = ema_reference(x2, w1, b1, w2, b2)
    y2 = jax.block_until_ready(
        ema_forward(x2, w1, b1, w2, b2, force_tiled=True, blk_hw=128))
    assert jnp.allclose(y2, y2_ref, atol=1e-5, rtol=1e-5), "masked tiled mismatch"

    print("KERNEL_OK")
</pallas_src>

<mosaic_0001>
module attributes {stable_mosaic.version = 11 : i64} {
  func.func @_ema_resident_kernel(%arg0: i32, %arg1: memref<1x16x256xf32, #tpu.memory_space<vmem>>, %arg2: memref<16x4xf32, #tpu.memory_space<vmem>>, %arg3: memref<1x4xf32, #tpu.memory_space<vmem>>, %arg4: memref<4x16xf32, #tpu.memory_space<vmem>>, %arg5: memref<1x16xf32, #tpu.memory_space<vmem>>, %arg6: memref<1x16x256xf32, #tpu.memory_space<vmem>>) attributes {dimension_semantics = [#tpu.dimension_semantics<parallel>], iteration_bounds = array<i64: 2>, scalar_prefetch = 0 : i64, scratch_operands = 0 : i64, tpu.core_type = #tpu.core_type<tc>, window_params = [{transform_indices = @transform_0, window_bounds = array<i64: 1, 16, 256>}, {pipeline_mode = #tpu.pipeline_mode<synchronous>, transform_indices = @transform_1, window_bounds = array<i64: 16, 4>}, {pipeline_mode = #tpu.pipeline_mode<synchronous>, transform_indices = @transform_2, window_bounds = array<i64: 1, 4>}, {pipeline_mode = #tpu.pipeline_mode<synchronous>, transform_indices = @transform_3, window_bounds = array<i64: 4, 16>}, {pipeline_mode = #tpu.pipeline_mode<synchronous>, transform_indices = @transform_4, window_bounds = array<i64: 1, 16>}, {transform_indices = @transform_5, window_bounds = array<i64: 1, 16, 256>}]} {
    %c0 = arith.constant 0 : index
    %c0_0 = arith.constant 0 : index
    %c0_1 = arith.constant 0 : index
    %0 = vector.load %arg1[%c0, %c0_0, %c0_1] : memref<1x16x256xf32, #tpu.memory_space<vmem>>, vector<1x16x256xf32>
    %cst = arith.constant dense<0.000000e+00> : vector<1x16xf32>
    %1 = vector.multi_reduction <add>, %0, %cst [2] : vector<1x16x256xf32> to vector<1x16xf32>
    %cst_2 = arith.constant dense<0xFF800000> : vector<1x16xf32>
    %2 = vector.multi_reduction <maximumf>, %0, %cst_2 [2] : vector<1x16x256xf32> to vector<1x16xf32>
    %cst_3 = arith.constant 3.906250e-03 : f32
    %3 = vector.broadcast %cst_3 : f32 to vector<1x16xf32>
    %4 = arith.mulf %1, %3 : vector<1x16xf32>
    %5 = arith.addf %4, %2 : vector<1x16xf32>
    %c0_4 = arith.constant 0 : index
    %c0_5 = arith.constant 0 : index
    %6 = vector.load %arg2[%c0_4, %c0_5] : memref<16x4xf32, #tpu.memory_space<vmem>>, vector<16x4xf32>
    %c0_6 = arith.constant 0 : index
    %c0_7 = arith.constant 0 : index
    %7 = vector.load %arg4[%c0_6, %c0_7] : memref<4x16xf32, #tpu.memory_space<vmem>>, vector<4x16xf32>
    %c0_8 = arith.constant 0 : index
    %c0_9 = arith.constant 0 : index
    %8 = vector.load %arg3[%c0_8, %c0_9] : memref<1x4xf32, #tpu.memory_space<vmem>>, vector<1x4xf32>
    %c0_10 = arith.constant 0 : index
    %c0_11 = arith.constant 0 : index
    %9 = vector.load %arg5[%c0_10, %c0_11] : memref<1x16xf32, #tpu.memory_space<vmem>>, vector<1x16xf32>
    %cst_12 = arith.constant dense<0.000000e+00> : vector<1x4xf32>
    %10 = tpu.matmul %5, %6, %cst_12 {dimension_numbers = #tpu.dot_dimension_numbers<[1], [0], [0], [1], [0, 0, 1, 1], [], []>} : vector<1x16xf32>, vector<16x4xf32>, vector<1x4xf32> -> vector<1x4xf32>
    %11 = arith.addf %10, %8 : vector<1x4xf32>
    %cst_13 = arith.constant 0.000000e+00 : f32
    %12 = vector.broadcast %cst_13 : f32 to vector<1x4xf32>
    %13 = arith.maximumf %11, %12 : vector<1x4xf32>
    %cst_14 = arith.constant dense<0.000000e+00> : vector<1x16xf32>
    %14 = tpu.matmul %13, %7, %cst_14 {dimension_numbers = #tpu.dot_dimension_numbers<[1], [0], [0], [1], [0, 0, 1, 1], [], []>} : vector<1x4xf32>, vector<4x16xf32>, vector<1x16xf32> -> vector<1x16xf32>
    %15 = arith.addf %14, %9 : vector<1x16xf32>
    %cst_15 = arith.constant 0.000000e+00 : f32
    %16 = vector.broadcast %cst_15 : f32 to vector<1x16xf32>
    %17 = arith.subf %16, %15 : vector<1x16xf32>
    %18 = math.exp %17 : vector<1x16xf32>
    %cst_16 = arith.constant 1.000000e+00 : f32
    %19 = vector.broadcast %cst_16 : f32 to vector<1x16xf32>
    %20 = arith.addf %19, %18 : vector<1x16xf32>
    %cst_17 = arith.constant 1.000000e+00 : f32
    %21 = vector.broadcast %cst_17 : f32 to vector<1x16xf32>
    %22 = arith.divf %21, %20 : vector<1x16xf32>
    %23 = vector.shape_cast %22 : vector<1x16xf32> to vector<1x16x1xf32>
    %24 = vector.broadcast %23 : vector<1x16x1xf32> to vector<1x16x256xf32>
    %25 = arith.mulf %0, %24 : vector<1x16x256xf32>
    %c0_18 = arith.constant 0 : index
    %c0_19 = arith.constant 0 : index
    %c0_20 = arith.constant 0 : index
    %26 = vector.load %arg6[%c0_18, %c0_19, %c0_20] : memref<1x16x256xf32, #tpu.memory_space<vmem>>, vector<1x16x256xf32>
    tpu.vector_store %arg6[%c0_18, %c0_19, %c0_20], %25 {strides = array<i32>} : memref<1x16x256xf32, #tpu.memory_space<vmem>>, vector<1x16x256xf32>,
    return
  }
  func.func @transform_0(%arg0: i32) -> (i32, i32, i32) {
    %c0_i32 = arith.constant 0 : i32
    %c0_i32_0 = arith.constant 0 : i32
    %c0_i32_1 = arith.constant 0 : i32
    return %arg0, %c0_i32, %c0_i32_0 : i32, i32, i32
  }
  func.func @transform_1(%arg0: i32) -> (i32, i32) {
    %c0_i32 = arith.constant 0 : i32
    %c0_i32_0 = arith.constant 0 : i32
    %c0_i32_1 = arith.constant 0 : i32
    return %c0_i32, %c0_i32_0 : i32, i32
  }
  func.func @transform_2(%arg0: i32) -> (i32, i32) {
    %c0_i32 = arith.constant 0 : i32
    %c0_i32_0 = arith.constant 0 : i32
    %c0_i32_1 = arith.constant 0 : i32
    return %c0_i32, %c0_i32_0 : i32, i32
  }
  func.func @transform_3(%arg0: i32) -> (i32, i32) {
    %c0_i32 = arith.constant 0 : i32
    %c0_i32_0 = arith.constant 0 : i32
    %c0_i32_1 = arith.constant 0 : i32
    return %c0_i32, %c0_i32_0 : i32, i32
  }
  func.func @transform_4(%arg0: i32) -> (i32, i32) {
    %c0_i32 = arith.constant 0 : i32
    %c0_i32_0 = arith.constant 0 : i32
    %c0_i32_1 = arith.constant 0 : i32
    return %c0_i32, %c0_i32_0 : i32, i32
  }
  func.func @transform_5(%arg0: i32) -> (i32, i32, i32) {
    %c0_i32 = arith.constant 0 : i32
    %c0_i32_0 = arith.constant 0 : i32
    %c0_i32_1 = arith.constant 0 : i32
    return %arg0, %c0_i32, %c0_i32_0 : i32, i32, i32
  }
}

</mosaic_0001>

<llo_original>
// kernel: tpu_custom_call.1
$region0: #{tpu_custom_call.1}
  #allocation0 [shape = 'u32[]', space=smem, size = 0x4, offset = 0x4, fixed_abs, tag = 'smem constant byte address 0x4 - core index']
  #allocation1 [shape = 'u32[144,128]{1,0:T(1,128)}', space=vmem, size = 0x12000, scoped, tag = 'internal scratch']
  %s0 = inlined_call_operand.hbm [shape: f32[2,16,256], index: 0, kind: input, shape index: {}]
  %s1 = inlined_call_operand.vmem [shape: f32[16,4], index: 1, kind: input, shape index: {}]
  %s2 = inlined_call_operand.vmem [shape: f32[1,4], index: 2, kind: input, shape index: {}]
  %s3 = inlined_call_operand.vmem [shape: f32[4,16], index: 3, kind: input, shape index: {}]
  %s4 = inlined_call_operand.vmem [shape: f32[1,16], index: 4, kind: input, shape index: {}]
  %s5 = inlined_call_operand.hbm [shape: f32[2,16,256], index: 5, kind: output, shape index: {}]
  %s6 = sld [smem:[#allocation0]]
  $region57: #{tpu_custom_call.1} parent=0
    _
  %s8 = ssub.s32 1, %s6
  %s9 = scalar_select 0, %s8, %s6
  $region1: #{tpu_custom_call.1} parent=0
    #allocation2 [shape = 'u8[32768]{0}', space=vmem, size = 0x8000, scoped, tag = 'input window, operand 0']
    #allocation3 [shape = 's32[2]{0}', space=sflag, size = 0x8, scoped, tag = 'scoped memory for tpu_custom_call.1']
    #allocation4 [shape = 's32[2]{0}', space=sflag, size = 0x8, scoped, tag = 'scoped memory for tpu_custom_call.1']
    #allocation5 [shape = 'u8[32768]{0}', space=vmem, size = 0x8000, scoped, tag = 'output window, operand 0']
    %10 = vsyncpa [#allocation3], 0
    %s11 = scalar_lea.sflag [#allocation3], 1
    %12 = vsyncpa %s11, 0
    %13 = vsyncpa [#allocation4], 0
    %s14 = scalar_lea.sflag [#allocation4], 1
    %15 = vsyncpa %s14, 0
    loop: start=0, step=1, limit=4
    $region2: #{tpu_custom_call.1} parent=1 // loop_pre_header
      _
    $region3: #{tpu_custom_call.1} parent=1 // loop_header
      %s17 = sphi 0, %s21
      %p18 = scmp.ge.s32.totalorder %s17, 4
      %s27 = sphi 0, %s29
      %s30 = sphi 0, %s27
      %s31 = sphi 0, %s30
      %s47 = sphi 0, %s31
      %s51 = sphi 0, %s51
      %s53 = sphi 0, %s51
      %s54 = sphi 0, %s53
      %s68 = sphi 0, %s54
      %s72 = sphi 0, %s72
      %s74 = sphi 0, %s72
      %s75 = sphi 0, %s74
      %s89 = sphi 0, %s75
      %s93 = sphi 0, %s93
      %s95 = sphi 0, %s93
      %s96 = sphi 0, %s95
      %s110 = sphi 0, %s96
      %s114 = sphi 0, %s114
      %s116 = sphi 0, %s114
      %s117 = sphi 0, %s116
      %s131 = sphi 0, %s117
      %s137 = sphi 0, %s139
      %s140 = sphi 0, %s137
      %s141 = sphi 0, %s140
      %s157 = sphi 0, %s141
    $region4: #{tpu_custom_call.1} parent=1 // loop_header_branch
      %20 = sbr.rel (%p18) target = $region8
    $region5: #{tpu_custom_call.1} parent=1 // loop_body
      %s22 = ssub.s32 %s17, 1
      %s23 = ssub.s32 %s17, 2
      %s24 = sadd.s32 %s17, 1
      %s25 = ssub.s32 %s17, %s24
      %p26 = scmp.eq.s32.totalorder %s25, 0
      %s28 = sadd.s32 %s27, 1
      %s29 = scalar_select %p26, %s27, %s28
      %p32 = pneg %p26
      %p33 = scmp.eq.s32.totalorder %s17, 1
      %p34 = por %p32, %p33
      %p35 = scmp.ne.s32.totalorder %s27, %s30
      %p36 = scmp.eq.s32.totalorder %s17, 0
      %p37 = por %p35, %p36
      %p38 = scmp.ne.s32.totalorder %s27, %s30
      %p39 = scmp.eq.s32.totalorder %s22, 1
      %p40 = por %p38, %p39
      %p41 = scmp.ne.s32.totalorder %s30, %s31
      %p42 = scmp.eq.s32.totalorder %s22, 0
      %p43 = por %p41, %p42
      %p44 = scmp.ne.s32.totalorder %s30, %s31
      %p45 = scmp.eq.s32.totalorder %s23, 1
      %p46 = por %p44, %p45
      %p48 = scmp.ne.s32.totalorder %s31, %s47
      %p49 = scmp.eq.s32.totalorder %s23, 0
      %p50 = por %p48, %p49
      %s52 = sadd.s32 %s51, 1
      %p55 = scmp.eq.s32.totalorder %s17, 1
      %p56 = scmp.ne.s32.totalorder %s51, %s53
      %p57 = scmp.eq.s32.totalorder %s17, 0
      %p58 = por %p56, %p57
      %p59 = scmp.ne.s32.totalorder %s51, %s53
      %p60 = scmp.eq.s32.totalorder %s22, 1
      %p61 = por %p59, %p60
      %p62 = scmp.ne.s32.totalorder %s53, %s54
      %p63 = scmp.eq.s32.totalorder %s22, 0
      %p64 = por %p62, %p63
      %p65 = scmp.ne.s32.totalorder %s53, %s54
      %p66 = scmp.eq.s32.totalorder %s23, 1
      %p67 = por %p65, %p66
      %p69 = scmp.ne.s32.totalorder %s54, %s68
      %p70 = scmp.eq.s32.totalorder %s23, 0
      %p71 = por %p69, %p70
      %s73 = sadd.s32 %s72, 1
      %p76 = scmp.eq.s32.totalorder %s17, 1
      %p77 = scmp.ne.s32.totalorder %s72, %s74
      %p78 = scmp.eq.s32.totalorder %s17, 0
      %p79 = por %p77, %p78
      %p80 = scmp.ne.s32.totalorder %s72, %s74
      %p81 = scmp.eq.s32.totalorder %s22, 1
      %p82 = por %p80, %p81
      %p83 = scmp.ne.s32.totalorder %s74, %s75
      %p84 = scmp.eq.s32.totalorder %s22, 0
      %p85 = por %p83, %p84
      %p86 = scmp.ne.s32.totalorder %s74, %s75
      %p87 = scmp.eq.s32.totalorder %s23, 1
      %p88 = por %p86, %p87
      %p90 = scmp.ne.s32.totalorder %s75, %s89
      %p91 = scmp.eq.s32.totalorder %s23, 0
      %p92 = por %p90, %p91
      %s94 = sadd.s32 %s93, 1
      %p97 = scmp.eq.s32.totalorder %s17, 1
      %p98 = scmp.ne.s32.totalorder %s93, %s95
      %p99 = scmp.eq.s32.totalorder %s17, 0
      %p100 = por %p98, %p99
      %p101 = scmp.ne.s32.totalorder %s93, %s95
      %p102 = scmp.eq.s32.totalorder %s22, 1
      %p103 = por %p101, %p102
      %p104 = scmp.ne.s32.totalorder %s95, %s96
      %p105 = scmp.eq.s32.totalorder %s22, 0
      %p106 = por %p104, %p105
      %p107 = scmp.ne.s32.totalorder %s95, %s96
      %p108 = scmp.eq.s32.totalorder %s23, 1
      %p109 = por %p107, %p108
      %p111 = scmp.ne.s32.totalorder %s96, %s110
      %p112 = scmp.eq.s32.totalorder %s23, 0
      %p113 = por %p111, %p112
      %s115 = sadd.s32 %s114, 1
      %p118 = scmp.eq.s32.totalorder %s17, 1
      %p119 = scmp.ne.s32.totalorder %s114, %s116
      %p120 = scmp.eq.s32.totalorder %s17, 0
      %p121 = por %p119, %p120
      %p122 = scmp.ne.s32.totalorder %s114, %s116
      %p123 = scmp.eq.s32.totalorder %s22, 1
      %p124 = por %p122, %p123
      %p125 = scmp.ne.s32.totalorder %s116, %s117
      %p126 = scmp.eq.s32.totalorder %s22, 0
      %p127 = por %p125, %p126
      %p128 = scmp.ne.s32.totalorder %s116, %s117
      %p129 = scmp.eq.s32.totalorder %s23, 1
      %p130 = por %p128, %p129
      %p132 = scmp.ne.s32.totalorder %s117, %s131
      %p133 = scmp.eq.s32.totalorder %s23, 0
      %p134 = por %p132, %p133
      %s135 = ssub.s32 %s17, %s24
      %p136 = scmp.eq.s32.totalorder %s135, 0
      %s138 = sadd.s32 %s137, 1
      %s139 = scalar_select %p136, %s137, %s138
      %p142 = pneg %p136
      %p143 = scmp.eq.s32.totalorder %s17, 1
      %p144 = por %p142, %p143
      %p145 = scmp.ne.s32.totalorder %s137, %s140
      %p146 = scmp.eq.s32.totalorder %s17, 0
      %p147 = por %p145, %p146
      %p148 = scmp.ne.s32.totalorder %s137, %s140
      %p149 = scmp.eq.s32.totalorder %s22, 1
      %p150 = por %p148, %p149
      %p151 = scmp.ne.s32.totalorder %s140, %s141
      %p152 = scmp.eq.s32.totalorder %s22, 0
      %p153 = por %p151, %p152
      %p154 = scmp.ne.s32.totalorder %s140, %s141
      %p155 = scmp.eq.s32.totalorder %s23, 1
      %p156 = por %p154, %p155
      %p158 = scmp.ne.s32.totalorder %s141, %s157
      %p159 = scmp.eq.s32.totalorder %s23, 0
      %p160 = por %p158, %p159
      %p161 = scmp.le.s32.totalorder 1, %s17
      %p162 = scmp.lt.s32.totalorder %s17, 3
      %p163 = pnand %p161, %p162
      %p164 = pneg %p163
      // Predicated region
      $region9: #{tpu_custom_call.1} parent=5 // pred_check
        _
      $region10: #{tpu_custom_call.1} parent=5 // pred_check_branch
        %166 = sbr.rel (%p163) target = $region12
      $region11: #{tpu_custom_call.1} parent=5 // pred_region
        %s167 = ssub.s32 %s17, 1
        // Predicated region
        $region13: #{tpu_custom_call.1} parent=11 // pred_check
          %p168 = pneg %p64
        $region14: #{tpu_custom_call.1} parent=11 // pred_check_branch
          %170 = sbr.rel (%p168) target = $region16
        $region15: #{tpu_custom_call.1} parent=11 // pred_region
          _
        $region16: #{tpu_custom_call.1} parent=11 // pred_fallthru
          _
        // Predicated region
        $region17: #{tpu_custom_call.1} parent=11 // pred_check
          %p171 = pneg %p85
        $region18: #{tpu_custom_call.1} parent=11 // pred_check_branch
          %173 = sbr.rel (%p171) target = $region20
        $region19: #{tpu_custom_call.1} parent=11 // pred_region
          _
        $region20: #{tpu_custom_call.1} parent=11 // pred_fallthru
          _
        // Predicated region
        $region21: #{tpu_custom_call.1} parent=11 // pred_check
          %p174 = pneg %p106
        $region22: #{tpu_custom_call.1} parent=11 // pred_check_branch
          %176 = sbr.rel (%p174) target = $region24
        $region23: #{tpu_custom_call.1} parent=11 // pred_region
          _
        $region24: #{tpu_custom_call.1} parent=11 // pred_fallthru
          _
        // Predicated region
        $region25: #{tpu_custom_call.1} parent=11 // pred_check
          %p177 = pneg %p127
        $region26: #{tpu_custom_call.1} parent=11 // pred_check_branch
          %179 = sbr.rel (%p177) target = $region28
        $region27: #{tpu_custom_call.1} parent=11 // pred_region
          _
        $region28: #{tpu_custom_call.1} parent=11 // pred_fallthru
          _
      $region12: #{tpu_custom_call.1} parent=5 // pred_fallthru
        _
      %p180 = scmp.lt.s32.totalorder %s17, 2
      // Predicated region
      $region29: #{tpu_custom_call.1} parent=5 // pred_check
        %p181 = pneg %p180
      $region30: #{tpu_custom_call.1} parent=5 // pred_check_branch
        %183 = sbr.rel (%p181) target = $region32
      $region31: #{tpu_custom_call.1} parent=5 // pred_region
        // Predicated region
        $region33: #{tpu_custom_call.1} parent=31 // pred_check
          %p184 = pneg %p37
        $region34: #{tpu_custom_call.1} parent=31 // pred_check_branch
          %186 = sbr.rel (%p184) target = $region36
        $region35: #{tpu_custom_call.1} parent=31 // pred_region
          %s187 = sand.u32 %s27, 1
          %s188 = scalar_lea.sflag [#allocation3], %s187
          %s189 = sand.u32 %s27, 1
          %s190 = smul.addr %s189, 32
          %s191 = scalar_lea.vmem [#allocation2], %s190
          %s193 = ssub.s32 512, 512
          %194 = vsyncadd %s188, %s193
          %s195 = smul.addr %s17, 4
          %s196 = smul.addr %s195, 128
          %s197 = scalar_lea.hbm %s0, %s196
          %s198 = sshll.u32 %s191, 4
          %s199 = int_to_ptr.vmem [resolvable:$true] %s198
          %204 = dma.hbm_to_vmem [thread:$0]  %s197, 512, %s199, %s188, 256, 256, 16
        $region36: #{tpu_custom_call.1} parent=31 // pred_fallthru
          _
      $region32: #{tpu_custom_call.1} parent=5 // pred_fallthru
        _
      %p205 = scmp.le.s32.totalorder 1, %s17
      %p206 = scmp.lt.s32.totalorder %s17, 3
      %p207 = pnand %p205, %p206
      %p208 = pneg %p207
      // Predicated region
      $region37: #{tpu_custom_call.1} parent=5 // pred_check
        _
      $region38: #{tpu_custom_call.1} parent=5 // pred_check_branch
        %210 = sbr.rel (%p207) target = $region40
      $region39: #{tpu_custom_call.1} parent=5 // pred_region
        %s211 = ssub.s32 %s17, 1
        %s212 = sand.u32 %s30, 1
        %s213 = scalar_lea.sflag [#allocation3], %s212
        %s214 = sand.u32 %s30, 1
        %s215 = smul.addr %s214, 32
        %s216 = scalar_lea.vmem [#allocation2], %s215
        // Predicated region
        $region41: #{tpu_custom_call.1} parent=39 // pred_check
          %p217 = pneg %p43
        $region42: #{tpu_custom_call.1} parent=39 // pred_check_branch
          %219 = sbr.rel (%p217) target = $region44
        $region43: #{tpu_custom_call.1} parent=39 // pred_region
          %220 = dma.done %s213, 512
        $region44: #{tpu_custom_call.1} parent=39 // pred_fallthru
          _
        %s221 = sand.u32 %s30, 1
        %s222 = scalar_lea.sflag [#allocation3], %s221
        %s223 = sand.u32 %s30, 1
        %s224 = smul.addr %s223, 32
        %s225 = scalar_lea.vmem [#allocation2], %s224
        %p226 = pneg %p43
        %p227 = pneg %p40
        %p228 = pneg %p64
        %p229 = pneg %p61
        %p230 = pneg %p85
        %p231 = pneg %p82
        %p232 = pneg %p106
        %p233 = pneg %p103
        %p234 = pneg %p127
        %p235 = pneg %p124
        %p236 = pneg %p153
        %p237 = pneg %p150
        %s238 = sand.u32 %s140, 1
        %s239 = scalar_lea.sflag [#allocation4], %s238
        %s240 = sand.u32 %s140, 1
        %s241 = smul.addr %s240, 32
        %s242 = scalar_lea.vmem [#allocation5], %s241
        %v243 = vld [vmem:[%s216] sm:$0xff]
        %v244 = vld [vmem:[%s216 + $0x8] sm:$0xff]
        %v245 = vld [vmem:[%s216 + $0x10] sm:$0xff]
        %v246 = vld [vmem:[%s216 + $0x18] sm:$0xff]
        %v247 = vadd.f32 %v243, %v244
        %248 = vadd.xlane.f32.xlu0 %v247
        %v249 = vpop.xlane.xlu0 %248
        %v250 = vadd.f32 %v245, %v246
        %251 = vadd.xlane.f32.xlu0 %v250
        %v252 = vpop.xlane.xlu0 %251
        %v253 = vmax.f32 %v243, %v244
        %254 = vmax.xlane.f32.xlu0 %v253
        %v255 = vpop.xlane.xlu0 %254
        %v256 = vmax.f32 %v245, %v246
        %257 = vmax.xlane.f32.xlu0 %v256
        %v258 = vpop.xlane.xlu0 %257
        %v259 = vmul.f32 %v249, 0.00390625
        %v260 = vmul.f32 %v252, 0.00390625
        %v261 = vadd.f32 %v259, %v255
        %v262 = vadd.f32 %v260, %v258
        %v263 = vld [vmem:[%s1] sm:$0xff]
        %v264 = vld [vmem:[%s1 + $0x8] sm:$0xff]
        %v265 = vld [vmem:[%s3] sm:$0xf]
        %v266 = vld [vmem:[%s2] sm:$0x1]
        %v267 = vld [vmem:[%s4] sm:$0x1]
        %v270 = vlaneseq
        %v271 = vand.u32 %v270, 127
        %v272 = vlaneseq
        %v273 = vshrl.u32 %v272, 7
        %v274 = vsub.s32 %v271, %v273
        %v275 = vrot.slane %v261, %v274
        %v276 = vadd.s32 %v271, 4294967288
        %v277 = vlaneseq
        %v278 = vshrl.u32 %v277, 7
        %v279 = vsub.s32 %v276, %v278
        %v280 = vrot.slane %v262, %v279
        %vm281 = vcmask 130112
        %v282 = vsel %vm281, %v280, %v275
        %vm283 = vcmask 130048
        %v284 = vsel %vm283, %v282, 0
        %286 = vmatprep.subr.mxu0 0.0
        %287 = vmatpush1.msra.mxu0 %v263
        %288 = vmatprep.subr.mxu0 0.0
        %289 = vmatpush1.msra.mxu0 %v264
        %290 = vmatprep.subr.mxu0 0.0
        %291 = vmatpush1.msra.mxu0 0.0
        %292 = vmatprep.subr.mxu0 0.0
        %293 = vmatpush1.msra.mxu0 0.0
        %294 = vmatprep.subr.mxu0 0.0
        %295 = vmatpush1.msra.mxu0 0.0
        %296 = vmatprep.subr.mxu0 0.0
        %297 = vmatpush1.msra.mxu0 0.0
        %298 = vmatprep.subr.mxu0 0.0
        %299 = vmatpush1.msra.mxu0 0.0
        %300 = vmatprep.subr.mxu0 0.0
        %301 = vmatpush1.msra.mxu0 0.0
        %302 = vmatprep.subr.mxu0 0.0
        %303 = vmatpush1.msra.mxu0 0.0
        %304 = vmatprep.subr.mxu0 0.0
        %305 = vmatpush1.msra.mxu0 0.0
        %306 = vmatprep.subr.mxu0 0.0
        %307 = vmatpush1.msra.mxu0 0.0
        %308 = vmatprep.subr.mxu0 0.0
        %309 = vmatpush1.msra.mxu0 0.0
        %310 = vmatprep.subr.mxu0 0.0
        %311 = vmatpush1.msra.mxu0 0.0
        %312 = vmatprep.subr.mxu0 0.0
        %313 = vmatpush1.msra.mxu0 0.0
        %314 = vmatprep.subr.mxu0 0.0
        %315 = vmatpush1.msra.mxu0 0.0
        %316 = vmatprep.subr.mxu0 0.0
        %317 = vmatpush1.msra.mxu0 0.0
        %318 = vmatprep.subr.mxu0 0.0
        %319 = vmatpush1.msra.mxu0 0.0
        %320 = vmatprep.subr.mxu0 0.0
        %321 = vmatpush1.msra.mxu0 0.0
        %322 = vmatprep.subr.mxu0 0.0
        %323 = vmatpush1.msra.mxu0 0.0
        %324 = vmatprep.subr.mxu0 0.0
        %325 = vmatpush1.msra.mxu0 0.0
        %326 = vmatprep.subr.mxu0 0.0
        %327 = vmatpush1.msra.mxu0 0.0
        %328 = vmatprep.subr.mxu0 0.0
        %329 = vmatpush1.msra.mxu0 0.0
        %330 = vmatprep.subr.mxu0 0.0
        %331 = vmatpush1.msra.mxu0 0.0
        %332 = vmatprep.subr.mxu0 0.0
        %333 = vmatpush1.msra.mxu0 0.0
        %334 = vmatprep.subr.mxu0 0.0
        %335 = vmatpush1.msra.mxu0 0.0
        %336 = vmatprep.subr.mxu0 0.0
        %337 = vmatpush1.msra.mxu0 0.0
        %338 = vmatprep.subr.mxu0 0.0
        %339 = vmatpush1.msra.mxu0 0.0
        %340 = vmatprep.subr.mxu0 0.0
        %341 = vmatpush1.msra.mxu0 0.0
        %342 = vmatprep.subr.mxu0 0.0
        %343 = vmatpush1.msra.mxu0 0.0
        %344 = vmatprep.subr.mxu0 0.0
        %345 = vmatpush1.msra.mxu0 0.0
        %346 = vmatprep.subr.mxu0 0.0
        %347 = vmatpush1.msra.mxu0 0.0
        %348 = vmatprep.subr.mxu0 0.0
        %349 = vmatpush1.msra.mxu0 0.0
        %350 = vmatprep.mubr.f32.mxu0 0.0
        %351 = vmatmul.mubr.f32.gmra.mrb[0].mxu0 %v284
        %v352 = vpop.f32.mrb[0].mxu0
        %v353 = vadd.f32 %v266, %v352
        %v354 = vpop.f32.mrb[0].mxu0
        %355 = vdwg.mxu0
        %v356 = vmax.f32 %v353, 0.0
        %vm357 = vcmask 31744
        %v359 = vsel %vm357, %v356, 0
        %vm361 = vcmask 1043456
        %v363 = vsel %vm361, %v265, 0
        %365 = vmatprep.subr.mxu0 0.0
        %366 = vmatpush1.msra.mxu0 %v363
        %367 = vmatprep.subr.mxu0 0.0
        %368 = vmatpush1.msra.mxu0 0.0
        %369 = vmatprep.subr.mxu0 0.0
        %370 = vmatpush1.msra.mxu0 0.0
        %371 = vmatprep.subr.mxu0 0.0
        %372 = vmatpush1.msra.mxu0 0.0
        %373 = vmatprep.subr.mxu0 0.0
        %374 = vmatpush1.msra.mxu0 0.0
        %375 = vmatprep.subr.mxu0 0.0
        %376 = vmatpush1.msra.mxu0 0.0
        %377 = vmatprep.subr.mxu0 0.0
        %378 = vmatpush1.msra.mxu0 0.0
        %379 = vmatprep.subr.mxu0 0.0
        %380 = vmatpush1.msra.mxu0 0.0
        %381 = vmatprep.subr.mxu0 0.0
        %382 = vmatpush1.msra.mxu0 0.0
        %383 = vmatprep.subr.mxu0 0.0
        %384 = vmatpush1.msra.mxu0 0.0
        %385 = vmatprep.subr.mxu0 0.0
        %386 = vmatpush1.msra.mxu0 0.0
        %387 = vmatprep.subr.mxu0 0.0
        %388 = vmatpush1.msra.mxu0 0.0
        %389 = vmatprep.subr.mxu0 0.0
        %390 = vmatpush1.msra.mxu0 0.0
        %391 = vmatprep.subr.mxu0 0.0
        %392 = vmatpush1.msra.mxu0 0.0
        %393 = vmatprep.subr.mxu0 0.0
        %394 = vmatpush1.msra.mxu0 0.0
        %395 = vmatprep.subr.mxu0 0.0
        %396 = vmatpush1.msra.mxu0 0.0
        %397 = vmatprep.subr.mxu0 0.0
        %398 = vmatpush1.msra.mxu0 0.0
        %399 = vmatprep.subr.mxu0 0.0
        %400 = vmatpush1.msra.mxu0 0.0
        %401 = vmatprep.subr.mxu0 0.0
        %402 = vmatpush1.msra.mxu0 0.0
        %403 = vmatprep.subr.mxu0 0.0
        %404 = vmatpush1.msra.mxu0 0.0
        %405 = vmatprep.subr.mxu0 0.0
        %406 = vmatpush1.msra.mxu0 0.0
        %407 = vmatprep.subr.mxu0 0.0
        %408 = vmatpush1.msra.mxu0 0.0
        %409 = vmatprep.subr.mxu0 0.0
        %410 = vmatpush1.msra.mxu0 0.0
        %411 = vmatprep.subr.mxu0 0.0
        %412 = vmatpush1.msra.mxu0 0.0
        %413 = vmatprep.subr.mxu0 0.0
        %414 = vmatpush1.msra.mxu0 0.0
        %415 = vmatprep.subr.mxu0 0.0
        %416 = vmatpush1.msra.mxu0 0.0
        %417 = vmatprep.subr.mxu0 0.0
        %418 = vmatpush1.msra.mxu0 0.0
        %419 = vmatprep.subr.mxu0 0.0
        %420 = vmatpush1.msra.mxu0 0.0
        %421 = vmatprep.subr.mxu0 0.0
        %422 = vmatpush1.msra.mxu0 0.0
        %423 = vmatprep.subr.mxu0 0.0
        %424 = vmatpush1.msra.mxu0 0.0
        %425 = vmatprep.subr.mxu0 0.0
        %426 = vmatpush1.msra.mxu0 0.0
        %427 = vmatprep.subr.mxu0 0.0
        %428 = vmatpush1.msra.mxu0 0.0
        %429 = vmatprep.mubr.f32.mxu0 0.0
        %430 = vmatmul.mubr.f32.gmra.mrb[0].mxu0 %v359
        %v431 = vpop.f32.mrb[0].mxu0
        %v432 = vadd.f32 %v267, %v431
        %v433 = vpop.f32.mrb[0].mxu0
        %434 = vdwg.mxu0
        %v435 = vsub.f32 0.0, %v432
        %v436 = vmul.f32 %v435, 1.442695
        %v437 = vpow.pop %v436
        %v438 = vadd.f32 %v437, 1.0
        %v439 = vrcp.pop %v438
        %v440 = vmul.f32 1.0, %v439
        %v441 = vlaneseq
        %v442 = vshrl.u32 %v441, 7
        %v443 = vsub.s32 0, %v442
        %v444 = vrot.slane %v440, %v443
        %446 = vbcast.lane.b32.xlu0 %v444, 256
        %v447 = vpop.permute.xlu0 %446
        %s449 = sor.u32 256, 8
        %450 = vbcast.lane.b32.xlu0 %v444, %s449
        %v451 = vpop.permute.xlu0 %450
        %v452 = vmul.f32 %v243, %v447
        %v453 = vmul.f32 %v244, %v447
        %v454 = vmul.f32 %v245, %v451
        %v455 = vmul.f32 %v246, %v451
        %456 = vst [vmem:[%s242] sm:$0xff] %v452
        %457 = vst [vmem:[%s242 + $0x8] sm:$0xff] %v453
        %458 = vst [vmem:[%s242 + $0x10] sm:$0xff] %v454
        %459 = vst [vmem:[%s242 + $0x18] sm:$0xff] %v455
        %s460 = sand.u32 %s140, 1
        %s461 = scalar_lea.sflag [#allocation4], %s460
        %s462 = sand.u32 %s140, 1
        %s463 = smul.addr %s462, 32
        %s464 = scalar_lea.vmem [#allocation5], %s463
        // Predicated region
        $region45: #{tpu_custom_call.1} parent=39 // pred_check
          %p465 = pneg %p150
        $region46: #{tpu_custom_call.1} parent=39 // pred_check_branch
          %467 = sbr.rel (%p465) target = $region48
        $region47: #{tpu_custom_call.1} parent=39 // pred_region
          %s469 = ssub.s32 512, 512
          %470 = vsyncadd %s461, %s469
          %s471 = smul.addr %s22, 4
          %s472 = smul.addr %s471, 128
          %s473 = scalar_lea.hbm %s5, %s472
          %s474 = sshll.u32 %s464, 4
          %s475 = int_to_ptr.vmem [resolvable:$true] %s474
          %480 = dma.vmem_to_hbm [thread:$0]  %s475, 512, %s473, %s461, 256, 256, 16
        $region48: #{tpu_custom_call.1} parent=39 // pred_fallthru
          _
      $region40: #{tpu_custom_call.1} parent=5 // pred_fallthru
        _
      %p481 = scmp.le.s32.totalorder 2, %s17
      // Predicated region
      $region49: #{tpu_custom_call.1} parent=5 // pred_check
        %p482 = pneg %p481
      $region50: #{tpu_custom_call.1} parent=5 // pred_check_branch
        %484 = sbr.rel (%p482) target = $region52
      $region51: #{tpu_custom_call.1} parent=5 // pred_region
        %s485 = ssub.s32 %s17, 2
        // Predicated region
        $region53: #{tpu_custom_call.1} parent=51 // pred_check
          %p486 = pneg %p156
        $region54: #{tpu_custom_call.1} parent=51 // pred_check_branch
          %488 = sbr.rel (%p486) target = $region56
        $region55: #{tpu_custom_call.1} parent=51 // pred_region
          %s489 = sand.u32 %s141, 1
          %s490 = scalar_lea.sflag [#allocation4], %s489
          %s491 = sand.u32 %s141, 1
          %s492 = smul.addr %s491, 32
          %s493 = scalar_lea.vmem [#allocation5], %s492
          %494 = dma.done %s490, 512
        $region56: #{tpu_custom_call.1} parent=51 // pred_fallthru
          _
      $region52: #{tpu_custom_call.1} parent=5 // pred_fallthru
        _
    $region6: #{tpu_custom_call.1} parent=1 // loop_footer
      %s21 = sadd.s32 1, %s17
    $region7: #{tpu_custom_call.1} parent=1 // loop_footer_branch
      %16 = sbr.rel target = $region3
    $region8: #{tpu_custom_call.1} parent=1 // loop_exit
      _
    %495 = vsyncpa [#allocation3], 1
    %s496 = scalar_lea.sflag [#allocation3], 1
    %497 = vsyncpa %s496, 1
    %498 = vsyncpa [#allocation4], 1
    %s499 = scalar_lea.sflag [#allocation4], 1
    %500 = vsyncpa %s499, 1

</llo_original>
